<compile_context>
chip_gen: v6e
topology: v6e:2x2x1
jax: 0.10.0
libtpu: 0.0.40
codegen_flags: <defaults>
</compile_context>

<pallas_src>
import math
import numpy as np

import jax
import jax.numpy as jnp
from jax.experimental import pallas as pl
from jax.experimental.pallas import tpu as pltpu


_VMEM_LIMIT = 32 * 1024 * 1024  # double-buffered tiles fit comfortably on v5e/v6e/v7x


def _pick_tiles(N, HWp):
    # sublane tile must divide N (or equal it); lane tile is a multiple of 128
    tn = 8 if N % 8 == 0 else N
    if HWp % 512 == 0:
        tl = 512
    elif HWp % 256 == 0:
        tl = 256
    else:
        tl = 128  # HWp is always a multiple of 128
    return tn, tl


# ----------------------------------------------------------------------------
# Kernel 1: decode
# ----------------------------------------------------------------------------
def _make_decode_call(n_attr, N, HWp, stride_w, stride_h, tn, tl):
    """Decode rows [0, n_attr) of raw prediction (attrs, N, HWp) -> decoded values."""
    num_cls = n_attr - 5 if n_attr > 5 else 0

    def decode_kernel(pred_ref, gx_ref, gy_ref, aw_ref, ah_ref, out_ref):
        p = pred_ref[...]                      # (n_attr, tn, tl)
        gx = gx_ref[...]                       # (1, tl)  broadcast over sublanes
        gy = gy_ref[...]
        aw = aw_ref[...]                       # (tn, 1)  broadcast over lanes
        ah = ah_ref[...]
        out_ref[0] = (jax.nn.sigmoid(p[0]) + gx) * stride_w
        out_ref[1] = (jax.nn.sigmoid(p[1]) + gy) * stride_h
        out_ref[2] = jnp.exp(p[2]) * aw * stride_w
        out_ref[3] = jnp.exp(p[3]) * ah * stride_h
        if n_attr >= 5:
            out_ref[4] = jax.nn.sigmoid(p[4])
        if num_cls > 0:
            out_ref[pl.ds(5, num_cls)] = jax.nn.sigmoid(p[5:])   # one slab store

    grid = (N // tn, HWp // tl)
    return pl.pallas_call(
        decode_kernel,
        out_shape=jax.ShapeDtypeStruct((n_attr, N, HWp), jnp.float32),
        grid_spec=pltpu.PrefetchScalarGridSpec(
            num_scalar_prefetch=0,
            grid=grid,
            in_specs=[
                pl.BlockSpec((n_attr, tn, tl), lambda i, j: (0, i, j)),
                pl.BlockSpec((1, tl), lambda i, j: (0, j)),
                pl.BlockSpec((1, tl), lambda i, j: (0, j)),
                pl.BlockSpec((tn, 1), lambda i, j: (i, 0)),
                pl.BlockSpec((tn, 1), lambda i, j: (i, 0)),
            ],
            out_specs=pl.BlockSpec((n_attr, tn, tl), lambda i, j: (0, i, j)),
        ),
        compiler_params=pltpu.CompilerParams(
            dimension_semantics=("parallel", "parallel"),
            vmem_limit_bytes=_VMEM_LIMIT),
    )


# ----------------------------------------------------------------------------
# Kernel 2: loss (tiled reduction)
# ----------------------------------------------------------------------------
def _make_loss_call(attrs, num_classes, N, HW, HWp,
                    lambda_xy, lambda_wh, lambda_conf, lambda_cls, tn, tl):
    """Raw prediction + target maps -> 7 scalar losses (SMEM), accumulated over tiles."""
    n_elems = float(N * HW)          # BCE/MSE mean divisor: unpadded element count
    C = num_classes

    def bce_logits(z, t):
        # stable -[t*log(sigmoid(z)) + (1-t)*log(1-sigmoid(z))]; masked entries are
        # multiplied by 0 afterwards, reproducing the reference's "contributes 0" path.
        return jnp.maximum(z, 0.0) - z * t + jnp.log1p(jnp.exp(-jnp.abs(z)))

    def loss_kernel(pred_ref, mask_ref, noobj_ref, tx_ref, ty_ref,
                    tw_ref, th_ref, gwxh_ref, tcls_ref, out_ref, acc_ref):
        i = pl.program_id(0)
        j = pl.program_id(1)

        @pl.when((i == 0) & (j == 0))
        def _init():
            for s in range(8):
                acc_ref[s] = jnp.float32(0.0)

        p = pred_ref[...]                    # (attrs, tn, tl) raw logits
        mask = mask_ref[...]                 # (tn, tl), zero in the HW padding
        noobj = noobj_ref[...]               # (tn, tl), zero in the HW padding
        zx, zy, w, h, zc = p[0], p[1], p[2], p[3], p[4]

        mt = mask * (2.0 - gwxh_ref[...]) ** 2       # hoisted, shared by w/h terms

        s_x = jnp.sum(mask * bce_logits(zx, tx_ref[...]))
        s_y = jnp.sum(mask * bce_logits(zy, ty_ref[...]))
        s_w = jnp.sum(((w - tw_ref[...]) * mt) ** 2)
        s_h = jnp.sum(((h - th_ref[...]) * mt) ** 2)
        s_conf = (jnp.sum(mask * bce_logits(zc, 1.0))
                  + 0.5 * jnp.sum(noobj * bce_logits(zc, 0.0)))
        s_cls = jnp.sum(mask[None] * bce_logits(p[5:], tcls_ref[...]))
        n_pos = jnp.sum(mask)

        acc_ref[0] += s_x
        acc_ref[1] += s_y
        acc_ref[2] += s_w
        acc_ref[3] += s_h
        acc_ref[4] += s_conf
        acc_ref[5] += s_cls
        acc_ref[6] += n_pos

        @pl.when((i == pl.num_programs(0) - 1) & (j == pl.num_programs(1) - 1))
        def _finalize():
            inv_n = 1.0 / n_elems
            loss_x = acc_ref[0] * inv_n
            loss_y = acc_ref[1] * inv_n
            loss_w = acc_ref[2] * inv_n
            loss_h = acc_ref[3] * inv_n
            loss_conf = acc_ref[4] * inv_n
            # guard: batches with zero positive targets would otherwise produce NaN
            loss_cls = acc_ref[5] / (jnp.maximum(acc_ref[6], 1.0) * float(C))
            total = ((loss_x + loss_y) * lambda_xy + (loss_w + loss_h) * lambda_wh
                     + loss_conf * lambda_conf + loss_cls * lambda_cls)
            out_ref[0] = total
            out_ref[1] = loss_x
            out_ref[2] = loss_y
            out_ref[3] = loss_w
            out_ref[4] = loss_h
            out_ref[5] = loss_conf
            out_ref[6] = loss_cls

    grid = (N // tn, HWp // tl)
    map_spec = pl.BlockSpec((tn, tl), lambda i, j: (i, j))
    return pl.pallas_call(
        loss_kernel,
        out_shape=jax.ShapeDtypeStruct((7,), jnp.float32),
        grid_spec=pltpu.PrefetchScalarGridSpec(
            num_scalar_prefetch=0,
            grid=grid,
            in_specs=[pl.BlockSpec((attrs, tn, tl), lambda i, j: (0, i, j))]
                     + [map_spec] * 7
                     + [pl.BlockSpec((C, tn, tl), lambda i, j: (0, i, j))],
            out_specs=pl.BlockSpec((7,), lambda i, j: (0,),
                                   memory_space=pltpu.MemorySpace.SMEM),
            scratch_shapes=[pltpu.SMEM((8,), jnp.float32)],
        ),
        compiler_params=pltpu.CompilerParams(
            dimension_semantics=("arbitrary", "arbitrary"),
            vmem_limit_bytes=_VMEM_LIMIT),
    )


# ----------------------------------------------------------------------------
# Host-side glue (target assignment), mirroring the PyTorch CPU loops
# ----------------------------------------------------------------------------
def _bbox_iou_np(box1, box2, x1y1x2y2=True):
    box1 = np.asarray(box1, np.float64)
    box2 = np.asarray(box2, np.float64)
    if not x1y1x2y2:
        b1_x1, b1_x2 = box1[:, 0] - box1[:, 2] / 2, box1[:, 0] + box1[:, 2] / 2
        b1_y1, b1_y2 = box1[:, 1] - box1[:, 3] / 2, box1[:, 1] + box1[:, 3] / 2
        b2_x1, b2_x2 = box2[:, 0] - box2[:, 2] / 2, box2[:, 0] + box2[:, 2] / 2
        b2_y1, b2_y2 = box2[:, 1] - box2[:, 3] / 2, box2[:, 1] + box2[:, 3] / 2
    else:
        b1_x1, b1_y1, b1_x2, b1_y2 = box1[:, 0], box1[:, 1], box1[:, 2], box1[:, 3]
        b2_x1, b2_y1, b2_x2, b2_y2 = box2[:, 0], box2[:, 1], box2[:, 2], box2[:, 3]
    inter_x1 = np.maximum(b1_x1, b2_x1)
    inter_y1 = np.maximum(b1_y1, b2_y1)
    inter_x2 = np.minimum(b1_x2, b2_x2)
    inter_y2 = np.minimum(b1_y2, b2_y2)
    inter = np.clip(inter_x2 - inter_x1 + 1, 0, None) * np.clip(inter_y2 - inter_y1 + 1, 0, None)
    area1 = (b1_x2 - b1_x1 + 1) * (b1_y2 - b1_y1 + 1)
    area2 = (b2_x2 - b2_x1 + 1) * (b2_y2 - b2_y1 + 1)
    return inter / (area1 + area2 - inter + 1e-16)


class YOLOLossPallas:
    def __init__(self, anchors, num_classes, img_size):
        self.anchors = anchors
        self.num_anchors = len(anchors)
        self.num_classes = num_classes
        self.bbox_attrs = 5 + num_classes
        self.img_size = img_size
        self.ignore_threshold = 0.5
        self.lambda_xy = 2.5
        self.lambda_wh = 2.5
        self.lambda_conf = 1.0
        self.lambda_cls = 1.0

    def forward(self, x, targets=None):
        bs, ch, in_h, in_w = x.shape
        A, attrs, C = self.num_anchors, self.bbox_attrs, self.num_classes
        assert ch == A * attrs
        stride_h = self.img_size[1] / in_h
        stride_w = self.img_size[0] / in_w
        scaled_anchors = [(a_w / stride_w, a_h / stride_h) for a_w, a_h in self.anchors]
        N = bs * A
        HW = in_h * in_w
        HWp = ((HW + 127) // 128) * 128          # lane-dense padding
        tn, tl = _pick_tiles(N, HWp)

        # glue: NCHW -> attribute-major (attrs, N, HWp)
        # TODO(synk): this transpose is an extra HBM round trip; folding it into the
        #             BlockSpec index_map (natural-layout reads) is a remaining opt.
        pred = jnp.asarray(x, jnp.float32).reshape(bs, A, attrs, in_h, in_w)
        pred = jnp.transpose(pred, (2, 0, 1, 3, 4)).reshape(attrs, N, HW)
        if HWp != HW:
            pred = jnp.pad(pred, ((0, 0), (0, 0), (0, HWp - HW)))

        # host-precomputed grid coordinates (no int div/mod on the VPU) and anchors
        gx_np = np.zeros((1, HWp), np.float32)
        gy_np = np.zeros((1, HWp), np.float32)
        gx_np[0, :HW] = np.tile(np.arange(in_w, dtype=np.float32), in_h)
        gy_np[0, :HW] = np.repeat(np.arange(in_h, dtype=np.float32), in_w)
        gx, gy = jnp.asarray(gx_np), jnp.asarray(gy_np)
        aw = jnp.asarray(np.array([scaled_anchors[r % A][0] for r in range(N)],
                                  np.float32).reshape(N, 1))
        ah = jnp.asarray(np.array([scaled_anchors[r % A][1] for r in range(N)],
                                  np.float32).reshape(N, 1))

        if targets is None:
            decode = _make_decode_call(attrs, N, HWp, stride_w, stride_h, tn, tl)
            dec = decode(pred, gx, gy, aw, ah)[:, :, :HW]          # (attrs, N, HW)
            return jnp.transpose(dec, (1, 2, 0)).reshape(bs, A * HW, attrs)

        # training branch: box-only (4-attr) decode in grid units for the ignore-IoU test
        decode4 = _make_decode_call(4, N, HWp, 1.0, 1.0, tn, tl)
        dec4 = decode4(pred, gx, gy, aw, ah)[:, :, :HW]            # (4, N, HW)
        pred_boxes = np.asarray(dec4).transpose(1, 2, 0).reshape(bs, A, in_h, in_w, 4)

        # TODO(synk): per-ground-truth target assignment stays on host (data-dependent scatter).
        tgt = self._get_target_np(np.asarray(targets), scaled_anchors, in_w, in_h,
                                  self.ignore_threshold, pred_boxes)
        mask, noobj_mask, tx, ty, tw, th, gwxh, _tconf, tcls = tgt

        def flat(a):   # (bs, A, H, W) -> zero-padded (N, HWp)
            buf = np.zeros((N, HWp), np.float32)
            buf[:, :HW] = a.reshape(N, HW)
            return jnp.asarray(buf)

        tcls_p = np.zeros((C, N, HWp), np.float32)
        tcls_p[:, :, :HW] = tcls.transpose(4, 0, 1, 2, 3).reshape(C, N, HW)

        loss_call = _make_loss_call(attrs, C, N, HW, HWp,
                                    self.lambda_xy, self.lambda_wh,
                                    self.lambda_conf, self.lambda_cls, tn, tl)
        losses = loss_call(pred, flat(mask), flat(noobj_mask), flat(tx), flat(ty),
                           flat(tw), flat(th), flat(gwxh), jnp.asarray(tcls_p))
        # (loss, loss_x, loss_y, loss_w, loss_h, loss_conf, loss_cls)
        return tuple(losses[i] for i in range(7))

    def _get_target_np(self, target, anchors, in_w, in_h, ignore_threshold, pred_boxes):
        bs = target.shape[0]
        A, C = self.num_anchors, self.num_classes
        mask = np.zeros((bs, A, in_h, in_w), np.float32)
        noobj_mask = np.ones((bs, A, in_h, in_w), np.float32)
        tx = np.zeros((bs, A, in_h, in_w), np.float32)
        ty = np.zeros_like(tx)
        tw = np.zeros_like(tx)
        th = np.zeros_like(tx)
        gwxh = np.zeros_like(tx)
        tconf = np.zeros_like(tx)
        tcls = np.zeros((bs, A, in_h, in_w, C), np.float32)
        sig = lambda v: 1.0 / (1.0 + math.exp(-float(v)))
        for b in range(bs):
            for t in range(target.shape[1]):
                if target[b, t].sum() == 0:
                    continue
                gx = target[b, t, 1] * in_w
                gy = target[b, t, 2] * in_h
                gw = target[b, t, 3] * in_w
                gh = target[b, t, 4] * in_h
                gi = int(gx)
                gj = int(gy)
                gt_box = np.array([[0.0, 0.0, gw, gh]], np.float32)
                anchor_shapes = np.concatenate((np.zeros((A, 2)), np.array(anchors)), 1)
                anch_ious = _bbox_iou_np(gt_box, anchor_shapes, x1y1x2y2=False)
                pred_ious = _bbox_iou_np(np.array([[gx, gy, gw, gh]], np.float32),
                                         pred_boxes[b, :, gj, gi], x1y1x2y2=False)
                noobj_mask[b, pred_ious > ignore_threshold, gj, gi] = 0
                best_n = int(np.argmax(anch_ious))
                mask[b, best_n, gj, gi] = 1
                tx[b, best_n, gj, gi] = gx - gi
                ty[b, best_n, gj, gi] = gy - gj
                tw[b, best_n, gj, gi] = math.log(gw / anchors[best_n][0] + 1e-16)
                th[b, best_n, gj, gi] = math.log(gh / anchors[best_n][1] + 1e-16)
                gwxh[b, best_n, gj, gi] = sig(gw) * sig(gh)
                tconf[b, best_n, gj, gi] = 1
                tcls[b, best_n, gj, gi, int(target[b, t, 0])] = 1
        return mask, noobj_mask, tx, ty, tw, th, gwxh, tconf, tcls


# ----------------------------------------------------------------------------
if __name__ == "__main__":
    anchors = [(10.0, 13.0), (16.0, 30.0), (33.0, 23.0)]
    num_classes = 2
    img_size = (64, 64)
    bs, in_h, in_w = 2, 8, 8

    yolo = YOLOLossPallas(anchors, num_classes, img_size)

    key = jax.random.PRNGKey(0)
    x = jax.random.normal(
        key, (bs, len(anchors) * (5 + num_classes), in_h, in_w), dtype=jnp.float32)

    targets = np.zeros((bs, 3, 5), np.float32)   # [cls, cx, cy, w, h], normalized
    targets[0, 0] = [0, 0.30, 0.40, 0.20, 0.30]
    targets[0, 1] = [1, 0.70, 0.60, 0.10, 0.15]
    targets[1, 0] = [1, 0.50, 0.55, 0.40, 0.35]

    # inference branch (targets=None): decoded (bs, A*H*W, 5+C)
    out = yolo.forward(x)
    # training branch: (loss, loss_x, loss_y, loss_w, loss_h, loss_conf, loss_cls)
    losses = yolo.forward(x, targets)

    jax.block_until_ready(out)
    jax.block_until_ready(losses)
    assert out.shape == (bs, len(anchors) * in_h * in_w, 5 + num_classes)
    assert len(losses) == 7
    assert all(bool(jnp.isfinite(l)) for l in losses)
    print("KERNEL_OK")
</pallas_src>

<mosaic_0001>
module attributes {stable_mosaic.version = 11 : i64} {
  func.func @decode_kernel(%arg0: i32, %arg1: i32, %arg2: memref<7x6x128xf32, #tpu.memory_space<vmem>>, %arg3: memref<1x128xf32, #tpu.memory_space<vmem>>, %arg4: memref<1x128xf32, #tpu.memory_space<vmem>>, %arg5: memref<6x1xf32, #tpu.memory_space<vmem>>, %arg6: memref<6x1xf32, #tpu.memory_space<vmem>>, %arg7: memref<7x6x128xf32, #tpu.memory_space<vmem>>) attributes {dimension_semantics = [#tpu.dimension_semantics<parallel>, #tpu.dimension_semantics<parallel>], iteration_bounds = array<i64: 1, 1>, scalar_prefetch = 0 : i64, scratch_operands = 0 : i64, tpu.core_type = #tpu.core_type<tc>, window_params = [{transform_indices = @transform_0, window_bounds = array<i64: 7, 6, 128>}, {transform_indices = @transform_1, window_bounds = array<i64: 1, 128>}, {transform_indices = @transform_2, window_bounds = array<i64: 1, 128>}, {transform_indices = @transform_3, window_bounds = array<i64: 6, 1>}, {transform_indices = @transform_4, window_bounds = array<i64: 6, 1>}, {transform_indices = @transform_5, window_bounds = array<i64: 7, 6, 128>}]} {
    %c0 = arith.constant 0 : index
    %c0_0 = arith.constant 0 : index
    %c0_1 = arith.constant 0 : index
    %0 = vector.load %arg2[%c0, %c0_0, %c0_1] : memref<7x6x128xf32, #tpu.memory_space<vmem>>, vector<7x6x128xf32>
    %c0_2 = arith.constant 0 : index
    %c0_3 = arith.constant 0 : index
    %1 = vector.load %arg3[%c0_2, %c0_3] : memref<1x128xf32, #tpu.memory_space<vmem>>, vector<1x128xf32>
    %c0_4 = arith.constant 0 : index
    %c0_5 = arith.constant 0 : index
    %2 = vector.load %arg4[%c0_4, %c0_5] : memref<1x128xf32, #tpu.memory_space<vmem>>, vector<1x128xf32>
    %c0_6 = arith.constant 0 : index
    %c0_7 = arith.constant 0 : index
    %3 = vector.load %arg5[%c0_6, %c0_7] : memref<6x1xf32, #tpu.memory_space<vmem>>, vector<6x1xf32>
    %c0_8 = arith.constant 0 : index
    %c0_9 = arith.constant 0 : index
    %4 = vector.load %arg6[%c0_8, %c0_9] : memref<6x1xf32, #tpu.memory_space<vmem>>, vector<6x1xf32>
    %5 = vector.extract_strided_slice %0 {offsets = [0, 0, 0], sizes = [1, 6, 128], strides = [1, 1, 1]} : vector<7x6x128xf32> to vector<1x6x128xf32>
    %6 = vector.shape_cast %5 : vector<1x6x128xf32> to vector<6x128xf32>
    %7 = arith.negf %6 : vector<6x128xf32>
    %8 = math.exp %7 : vector<6x128xf32>
    %cst = arith.constant 1.000000e+00 : f32
    %9 = vector.broadcast %cst : f32 to vector<6x128xf32>
    %10 = arith.addf %9, %8 : vector<6x128xf32>
    %11 = arith.divf %9, %10 : vector<6x128xf32>
    %12 = vector.broadcast %1 : vector<1x128xf32> to vector<6x128xf32>
    %13 = arith.addf %11, %12 : vector<6x128xf32>
    %cst_10 = arith.constant 8.000000e+00 : f32
    %14 = vector.broadcast %cst_10 : f32 to vector<6x128xf32>
    %15 = arith.mulf %13, %14 : vector<6x128xf32>
    %c0_11 = arith.constant 0 : index
    %c0_12 = arith.constant 0 : index
    %c0_13 = arith.constant 0 : index
    %16 = vector.load %arg7[%c0_11, %c0_12, %c0_13] : memref<7x6x128xf32, #tpu.memory_space<vmem>>, vector<1x6x128xf32>
    %17 = vector.shape_cast %16 : vector<1x6x128xf32> to vector<6x128xf32>
    %18 = vector.shape_cast %15 : vector<6x128xf32> to vector<1x6x128xf32>
    tpu.vector_store %arg7[%c0_11, %c0_12, %c0_13], %18 {strides = array<i32>} : memref<7x6x128xf32, #tpu.memory_space<vmem>>, vector<1x6x128xf32>,
    %19 = vector.extract_strided_slice %0 {offsets = [1, 0, 0], sizes = [1, 6, 128], strides = [1, 1, 1]} : vector<7x6x128xf32> to vector<1x6x128xf32>
    %20 = vector.shape_cast %19 : vector<1x6x128xf32> to vector<6x128xf32>
    %21 = arith.negf %20 : vector<6x128xf32>
    %22 = math.exp %21 : vector<6x128xf32>
    %cst_14 = arith.constant 1.000000e+00 : f32
    %23 = vector.broadcast %cst_14 : f32 to vector<6x128xf32>
    %24 = arith.addf %23, %22 : vector<6x128xf32>
    %25 = arith.divf %23, %24 : vector<6x128xf32>
    %26 = vector.broadcast %2 : vector<1x128xf32> to vector<6x128xf32>
    %27 = arith.addf %25, %26 : vector<6x128xf32>
    %cst_15 = arith.constant 8.000000e+00 : f32
    %28 = vector.broadcast %cst_15 : f32 to vector<6x128xf32>
    %29 = arith.mulf %27, %28 : vector<6x128xf32>
    %c1 = arith.constant 1 : index
    %c0_16 = arith.constant 0 : index
    %c0_17 = arith.constant 0 : index
    %30 = vector.load %arg7[%c1, %c0_16, %c0_17] : memref<7x6x128xf32, #tpu.memory_space<vmem>>, vector<1x6x128xf32>
    %31 = vector.shape_cast %30 : vector<1x6x128xf32> to vector<6x128xf32>
    %32 = vector.shape_cast %29 : vector<6x128xf32> to vector<1x6x128xf32>
    tpu.vector_store %arg7[%c1, %c0_16, %c0_17], %32 {strides = array<i32>} : memref<7x6x128xf32, #tpu.memory_space<vmem>>, vector<1x6x128xf32>,
    %33 = vector.extract_strided_slice %0 {offsets = [2, 0, 0], sizes = [1, 6, 128], strides = [1, 1, 1]} : vector<7x6x128xf32> to vector<1x6x128xf32>
    %34 = vector.shape_cast %33 : vector<1x6x128xf32> to vector<6x128xf32>
    %35 = math.exp %34 : vector<6x128xf32>
    %36 = vector.broadcast %3 : vector<6x1xf32> to vector<6x128xf32>
    %37 = arith.mulf %35, %36 : vector<6x128xf32>
    %cst_18 = arith.constant 8.000000e+00 : f32
    %38 = vector.broadcast %cst_18 : f32 to vector<6x128xf32>
    %39 = arith.mulf %37, %38 : vector<6x128xf32>
    %c2 = arith.constant 2 : index
    %c0_19 = arith.constant 0 : index
    %c0_20 = arith.constant 0 : index
    %40 = vector.load %arg7[%c2, %c0_19, %c0_20] : memref<7x6x128xf32, #tpu.memory_space<vmem>>, vector<1x6x128xf32>
    %41 = vector.shape_cast %40 : vector<1x6x128xf32> to vector<6x128xf32>
    %42 = vector.shape_cast %39 : vector<6x128xf32> to vector<1x6x128xf32>
    tpu.vector_store %arg7[%c2, %c0_19, %c0_20], %42 {strides = array<i32>} : memref<7x6x128xf32, #tpu.memory_space<vmem>>, vector<1x6x128xf32>,
    %43 = vector.extract_strided_slice %0 {offsets = [3, 0, 0], sizes = [1, 6, 128], strides = [1, 1, 1]} : vector<7x6x128xf32> to vector<1x6x128xf32>
    %44 = vector.shape_cast %43 : vector<1x6x128xf32> to vector<6x128xf32>
    %45 = math.exp %44 : vector<6x128xf32>
    %46 = vector.broadcast %4 : vector<6x1xf32> to vector<6x128xf32>
    %47 = arith.mulf %45, %46 : vector<6x128xf32>
    %cst_21 = arith.constant 8.000000e+00 : f32
    %48 = vector.broadcast %cst_21 : f32 to vector<6x128xf32>
    %49 = arith.mulf %47, %48 : vector<6x128xf32>
    %c3 = arith.constant 3 : index
    %c0_22 = arith.constant 0 : index
    %c0_23 = arith.constant 0 : index
    %50 = vector.load %arg7[%c3, %c0_22, %c0_23] : memref<7x6x128xf32, #tpu.memory_space<vmem>>, vector<1x6x128xf32>
    %51 = vector.shape_cast %50 : vector<1x6x128xf32> to vector<6x128xf32>
    %52 = vector.shape_cast %49 : vector<6x128xf32> to vector<1x6x128xf32>
    tpu.vector_store %arg7[%c3, %c0_22, %c0_23], %52 {strides = array<i32>} : memref<7x6x128xf32, #tpu.memory_space<vmem>>, vector<1x6x128xf32>,
    %53 = vector.extract_strided_slice %0 {offsets = [4, 0, 0], sizes = [1, 6, 128], strides = [1, 1, 1]} : vector<7x6x128xf32> to vector<1x6x128xf32>
    %54 = vector.shape_cast %53 : vector<1x6x128xf32> to vector<6x128xf32>
    %55 = arith.negf %54 : vector<6x128xf32>
    %56 = math.exp %55 : vector<6x128xf32>
    %cst_24 = arith.constant 1.000000e+00 : f32
    %57 = vector.broadcast %cst_24 : f32 to vector<6x128xf32>
    %58 = arith.addf %57, %56 : vector<6x128xf32>
    %59 = arith.divf %57, %58 : vector<6x128xf32>
    %c4 = arith.constant 4 : index
    %c0_25 = arith.constant 0 : index
    %c0_26 = arith.constant 0 : index
    %60 = vector.load %arg7[%c4, %c0_25, %c0_26] : memref<7x6x128xf32, #tpu.memory_space<vmem>>, vector<1x6x128xf32>
    %61 = vector.shape_cast %60 : vector<1x6x128xf32> to vector<6x128xf32>
    %62 = vector.shape_cast %59 : vector<6x128xf32> to vector<1x6x128xf32>
    tpu.vector_store %arg7[%c4, %c0_25, %c0_26], %62 {strides = array<i32>} : memref<7x6x128xf32, #tpu.memory_space<vmem>>, vector<1x6x128xf32>,
    %63 = vector.extract_strided_slice %0 {offsets = [5, 0, 0], sizes = [2, 6, 128], strides = [1, 1, 1]} : vector<7x6x128xf32> to vector<2x6x128xf32>
    %64 = arith.negf %63 : vector<2x6x128xf32>
    %65 = math.exp %64 : vector<2x6x128xf32>
    %cst_27 = arith.constant 1.000000e+00 : f32
    %66 = vector.broadcast %cst_27 : f32 to vector<2x6x128xf32>
    %67 = arith.addf %66, %65 : vector<2x6x128xf32>
    %68 = arith.divf %66, %67 : vector<2x6x128xf32>
    %c5 = arith.constant 5 : index
    %c0_28 = arith.constant 0 : index
    %c0_29 = arith.constant 0 : index
    %69 = vector.load %arg7[%c5, %c0_28, %c0_29] : memref<7x6x128xf32, #tpu.memory_space<vmem>>, vector<2x6x128xf32>
    tpu.vector_store %arg7[%c5, %c0_28, %c0_29], %68 {strides = array<i32>} : memref<7x6x128xf32, #tpu.memory_space<vmem>>, vector<2x6x128xf32>,
    return
  }
  func.func @transform_0(%arg0: i32, %arg1: i32) -> (i32, i32, i32) {
    %c0_i32 = arith.constant 0 : i32
    %c0_i32_0 = arith.constant 0 : i32
    return %c0_i32, %arg0, %arg1 : i32, i32, i32
  }
  func.func @transform_1(%arg0: i32, %arg1: i32) -> (i32, i32) {
    %c0_i32 = arith.constant 0 : i32
    %c0_i32_0 = arith.constant 0 : i32
    return %c0_i32, %arg1 : i32, i32
  }
  func.func @transform_2(%arg0: i32, %arg1: i32) -> (i32, i32) {
    %c0_i32 = arith.constant 0 : i32
    %c0_i32_0 = arith.constant 0 : i32
    return %c0_i32, %arg1 : i32, i32
  }
  func.func @transform_3(%arg0: i32, %arg1: i32) -> (i32, i32) {
    %c0_i32 = arith.constant 0 : i32
    %c0_i32_0 = arith.constant 0 : i32
    return %arg0, %c0_i32 : i32, i32
  }
  func.func @transform_4(%arg0: i32, %arg1: i32) -> (i32, i32) {
    %c0_i32 = arith.constant 0 : i32
    %c0_i32_0 = arith.constant 0 : i32
    return %arg0, %c0_i32 : i32, i32
  }
  func.func @transform_5(%arg0: i32, %arg1: i32) -> (i32, i32, i32) {
    %c0_i32 = arith.constant 0 : i32
    %c0_i32_0 = arith.constant 0 : i32
    return %c0_i32, %arg0, %arg1 : i32, i32, i32
  }
}

</mosaic_0001>

<llo_original>
// kernel: tpu_custom_call.1
$region0: #{tpu_custom_call.1}
  #allocation0 [shape = 'u32[]', space=smem, size = 0x4, offset = 0x4, fixed_abs, tag = 'smem constant byte address 0x4 - core index']
  #allocation1 [shape = 'u32[144,128]{1,0:T(1,128)}', space=vmem, size = 0x12000, scoped, tag = 'internal scratch']
  %s0 = inlined_call_operand.vmem [shape: f32[7,6,128], index: 0, kind: input, shape index: {}]
  %s1 = inlined_call_operand.vmem [shape: f32[1,128], index: 1, kind: input, shape index: {}]
  %s2 = inlined_call_operand.vmem [shape: f32[1,128], index: 2, kind: input, shape index: {}]
  %s3 = inlined_call_operand.vmem [shape: f32[6,1], index: 3, kind: input, shape index: {}]
  %s4 = inlined_call_operand.vmem [shape: f32[6,1], index: 4, kind: input, shape index: {}]
  %s5 = inlined_call_operand.vmem [shape: f32[7,6,128], index: 5, kind: output, shape index: {}]
  %s6 = sld [smem:[#allocation0]]
  $region30: #{tpu_custom_call.1} parent=0
    _
  %s8 = ssub.s32 1, %s6
  %s9 = scalar_select 0, %s8, %s6
  // Predicated region
  $region2: #{tpu_custom_call.1} parent=0 // pred_check
    _
  $region3: #{tpu_custom_call.1} parent=0 // pred_check_branch
    %11 = sbr.rel (0) target = $region5
  $region4: #{tpu_custom_call.1} parent=0 // pred_region
    _
  $region5: #{tpu_custom_call.1} parent=0 // pred_fallthru
    _
  // Predicated region
  $region6: #{tpu_custom_call.1} parent=0 // pred_check
    _
  $region7: #{tpu_custom_call.1} parent=0 // pred_check_branch
    %13 = sbr.rel (0) target = $region9
  $region8: #{tpu_custom_call.1} parent=0 // pred_region
    _
  $region9: #{tpu_custom_call.1} parent=0 // pred_fallthru
    _
  // Predicated region
  $region10: #{tpu_custom_call.1} parent=0 // pred_check
    _
  $region11: #{tpu_custom_call.1} parent=0 // pred_check_branch
    %15 = sbr.rel (0) target = $region13
  $region12: #{tpu_custom_call.1} parent=0 // pred_region
    _
  $region13: #{tpu_custom_call.1} parent=0 // pred_fallthru
    _
  // Predicated region
  $region14: #{tpu_custom_call.1} parent=0 // pred_check
    _
  $region15: #{tpu_custom_call.1} parent=0 // pred_check_branch
    %17 = sbr.rel (0) target = $region17
  $region16: #{tpu_custom_call.1} parent=0 // pred_region
    _
  $region17: #{tpu_custom_call.1} parent=0 // pred_fallthru
    _
  // Predicated region
  $region18: #{tpu_custom_call.1} parent=0 // pred_check
    _
  $region19: #{tpu_custom_call.1} parent=0 // pred_check_branch
    %19 = sbr.rel (0) target = $region21
  $region20: #{tpu_custom_call.1} parent=0 // pred_region
    _
  $region21: #{tpu_custom_call.1} parent=0 // pred_fallthru
    _
  %v20 = vld [vmem:[%s0] sm:$0x3f]
  %v21 = vld [vmem:[%s0 + $0x8] sm:$0x3f]
  %v22 = vld [vmem:[%s0 + $0x10] sm:$0x3f]
  %v23 = vld [vmem:[%s0 + $0x18] sm:$0x3f]
  %v24 = vld [vmem:[%s0 + $0x20] sm:$0x3f]
  %v25 = vld [vmem:[%s0 + $0x28] sm:$0x3f]
  %v26 = vld [vmem:[%s0 + $0x30] sm:$0x3f]
  %v27 = vld [vmem:[%s1] sm:$0x1]
  %v28 = vld [vmem:[%s2] sm:$0x1]
  %v29 = vld [vmem:[%s3] sm:$0x3f]
  %v30 = vld [vmem:[%s4] sm:$0x3f]
  %v31 = vxor.u32 %v20, 2147483648
  %v32 = vmul.f32 %v31, 1.442695
  %v33 = vpow.pop %v32
  %v34 = vadd.f32 %v33, 1.0
  %v35 = vrcp.pop %v34
  %v36 = vmul.f32 1.0, %v35
  %v38 = vlaneseq
  %v39 = vshrl.u32 %v38, 7
  %v40 = vsub.s32 0, %v39
  %v41 = vrot.slane %v27, %v40
  %v43 = vadd.f32 %v36, %v41
  %v44 = vmul.f32 %v43, 8.0
  %45 = vst [vmem:[%s5] sm:$0x3f] %v44
  %v46 = vxor.u32 %v21, 2147483648
  %v47 = vmul.f32 %v46, 1.442695
  %v48 = vpow.pop %v47
  %v49 = vadd.f32 %v48, 1.0
  %v50 = vrcp.pop %v49
  %v51 = vmul.f32 1.0, %v50
  %v53 = vlaneseq
  %v54 = vshrl.u32 %v53, 7
  %v55 = vsub.s32 0, %v54
  %v56 = vrot.slane %v28, %v55
  %v58 = vadd.f32 %v51, %v56
  %v59 = vmul.f32 %v58, 8.0
  %s60 = scalar_lea.vmem %s5, 8
  %61 = vst [vmem:[%s60] sm:$0x3f] %v59
  %v62 = vmul.f32 %v22, 1.442695
  %v63 = vpow.pop %v62
  %65 = vset.pattern.permute.xlu0 0
  %66 = vperm.xlu0 %65, %v29
  %v67 = vpop.permute.xlu0 %66
  %v69 = vmul.f32 %v63, %v67
  %v70 = vmul.f32 %v69, 8.0
  %s71 = scalar_lea.vmem %s5, 16
  %72 = vst [vmem:[%s71] sm:$0x3f] %v70
  %v73 = vmul.f32 %v23, 1.442695
  %v74 = vpow.pop %v73
  %76 = vset.pattern.permute.xlu0 0
  %77 = vperm.xlu0 %76, %v30
  %v78 = vpop.permute.xlu0 %77
  %v80 = vmul.f32 %v74, %v78
  %v81 = vmul.f32 %v80, 8.0
  %s82 = scalar_lea.vmem %s5, 24
  %83 = vst [vmem:[%s82] sm:$0x3f] %v81
  %v84 = vxor.u32 %v24, 2147483648
  %v85 = vmul.f32 %v84, 1.442695
  %v86 = vpow.pop %v85
  %v87 = vadd.f32 %v86, 1.0
  %v88 = vrcp.pop %v87
  %v89 = vmul.f32 1.0, %v88
  %s90 = scalar_lea.vmem %s5, 32
  %91 = vst [vmem:[%s90] sm:$0x3f] %v89
  %v92 = vxor.u32 %v25, 2147483648
  %v93 = vxor.u32 %v26, 2147483648
  %v94 = vmul.f32 %v92, 1.442695
  %v95 = vpow.pop %v94
  %v96 = vmul.f32 %v93, 1.442695
  %v97 = vpow.pop %v96
  %v98 = vadd.f32 %v95, 1.0
  %v99 = vadd.f32 %v97, 1.0
  %v100 = vrcp.pop %v98
  %v101 = vmul.f32 1.0, %v100
  %v102 = vrcp.pop %v99
  %v103 = vmul.f32 1.0, %v102
  %s104 = scalar_lea.vmem %s5, 40
  %105 = vst [vmem:[%s104] sm:$0x3f] %v101
  %106 = vst [vmem:[%s104 + $0x8] sm:$0x3f] %v103
  // Predicated region
  $region22: #{tpu_custom_call.1} parent=0 // pred_check
    _
  $region23: #{tpu_custom_call.1} parent=0 // pred_check_branch
    %108 = sbr.rel (0) target = $region25
  $region24: #{tpu_custom_call.1} parent=0 // pred_region
    _
  $region25: #{tpu_custom_call.1} parent=0 // pred_fallthru
    _
  // Predicated region
  $region26: #{tpu_custom_call.1} parent=0 // pred_check
    _
  $region27: #{tpu_custom_call.1} parent=0 // pred_check_branch
    %110 = sbr.rel (0) target = $region29
  $region28: #{tpu_custom_call.1} parent=0 // pred_region
    _
  $region29: #{tpu_custom_call.1} parent=0 // pred_fallthru
    _

</llo_original>
